<compile_context>
chip_gen: v7x
topology: tpu7x:2x2x1
jax: 0.10.0
libtpu: 0.0.40
codegen_flags: <defaults>
</compile_context>

<pallas_src>
import functools

import jax
import jax.numpy as jnp
from jax import lax
from jax.experimental import pallas as pl
from jax.experimental.pallas import tpu as pltpu

_NORM_EPS = 1e-12
# Conservative per-call VMEM budget (bytes) so double-buffered blocks fit the
# scoped defaults on every TPU generation (v5e 16 MiB is the tightest).
_VMEM_BUDGET = 12 * 1024 * 1024


def _block_bytes(g, n, c, tk, itemsize=4):
    # double-buffered x slab + weight tile + output tile
    return 2 * itemsize * (g * n * c + g * c * tk + g * n * tk)


def _pick_tiles(p, n, c, k, itemsize=4):
    """Pick (parts-per-step, K-tile) that divide the problem and fit VMEM."""
    # K tile: full K if small / not 128-aligned, else largest 128-multiple
    # divisor of K that keeps a single-part weight tile within budget.
    if k <= 512 or k % 128 != 0:
        tk = k
    else:
        tk = 128
        for cand in range(128, k + 1, 128):
            if k % cand == 0 and _block_bytes(1, n, c, cand, itemsize) <= _VMEM_BUDGET:
                tk = cand
    # Parts per step: largest divisor of p whose blocks fit the budget.
    g = 1
    for cand in range(1, p + 1):
        if p % cand == 0 and _block_bytes(cand, n, c, tk, itemsize) <= _VMEM_BUDGET:
            g = cand
    return g, tk


def _separate_fcs_kernel(x_ref, w_ref, out_ref, *, norm: bool):
    # x_ref:   (G, n, c)
    # w_ref:   (G, c, tk)
    # out_ref: (G, n, tk)
    x = x_ref[...].astype(jnp.float32)
    w = w_ref[...].astype(jnp.float32)

    if norm:
        # F.normalize(fc_bin, dim=1): L2 over the c axis, per output column.
        # max(sqrt(s), eps) == sqrt(max(s, eps^2)) -> single EUP rsqrt.
        sumsq = jnp.sum(w * w, axis=1, keepdims=True)            # (G, 1, tk)
        w = w * lax.rsqrt(jnp.maximum(sumsq, _NORM_EPS * _NORM_EPS))

    # Batched per-part matmul on the MXU, f32 accumulation.
    out = jnp.einsum("gnc,gck->gnk", x, w,
                     preferred_element_type=jnp.float32)          # (G, n, tk)
    out_ref[...] = out.astype(out_ref.dtype)


def separate_fcs(x, fc_bin, *, norm=False):
    """Forward pass of SeparateFCs.

    Args:
      x:      [n, c_in, p] float32
      fc_bin: [p, c_in, c_out] float32
    Returns:
      out: [n, c_out, p]
    """
    n, c, p = x.shape
    k = fc_bin.shape[-1]

    x_pnc = jnp.transpose(x, (2, 0, 1))                           # [p, n, c]

    g, tk = _pick_tiles(p, n, c, k, x.dtype.itemsize)
    grid = (p // g, k // tk)

    kernel = functools.partial(_separate_fcs_kernel, norm=norm)

    out_pnk = pl.pallas_call(
        kernel,
        out_shape=jax.ShapeDtypeStruct((p, n, k), x.dtype),
        grid_spec=pltpu.PrefetchScalarGridSpec(
            num_scalar_prefetch=0,
            grid=grid,
            in_specs=[
                # x slab: constant block index along the (inner) K axis so it
                # stays resident in VMEM while K tiles stream through.
                pl.BlockSpec((g, n, c), lambda i, j: (i, 0, 0)),
                pl.BlockSpec((g, c, tk), lambda i, j: (i, 0, j)),
            ],
            out_specs=pl.BlockSpec((g, n, tk), lambda i, j: (i, 0, j)),
        ),
        compiler_params=pltpu.CompilerParams(
            dimension_semantics=("parallel", "arbitrary")),
    )(x_pnc, fc_bin)

    # PyTorch return layout [n, c_out, p].
    # TODO(synk): skip this transpose if the consumer can take [p, n, c_out].
    return jnp.transpose(out_pnk, (1, 2, 0))


def _reference(x, fc_bin, norm=False):
    """Pure-JAX reference mirroring the PyTorch forward."""
    xp = jnp.transpose(x, (2, 0, 1))                              # [p, n, c]
    w = fc_bin
    if norm:
        w = w / jnp.maximum(
            jnp.linalg.norm(w, axis=1, keepdims=True), _NORM_EPS)
    out = jnp.einsum("pnc,pck->pnk", xp, w)
    return jnp.transpose(out, (1, 2, 0))                          # [n, k, p]


if __name__ == "__main__":
    parts_num = 4
    in_channels = 32
    out_channels = 16
    batch = 8

    key = jax.random.PRNGKey(0)
    kx, kw = jax.random.split(key, 2)

    x = jax.random.normal(kx, (batch, in_channels, parts_num), jnp.float32)

    # Xavier-uniform-style init for fc_bin [p, c_in, c_out].
    bound = (6.0 / (in_channels + out_channels)) ** 0.5
    fc_bin = jax.random.uniform(
        kw, (parts_num, in_channels, out_channels), jnp.float32, -bound, bound)

    # norm=False (module default) and norm=True (weight-normalized) paths.
    out_plain = separate_fcs(x, fc_bin, norm=False)
    out_norm = separate_fcs(x, fc_bin, norm=True)
    jax.block_until_ready((out_plain, out_norm))

    ref_plain = _reference(x, fc_bin, norm=False)
    ref_norm = _reference(x, fc_bin, norm=True)

    assert out_plain.shape == (batch, out_channels, parts_num)
    assert out_norm.shape == (batch, out_channels, parts_num)
    assert jnp.allclose(out_plain, ref_plain, atol=1e-5, rtol=1e-5)
    assert jnp.allclose(out_norm, ref_norm, atol=1e-5, rtol=1e-5)

    print("KERNEL_OK")
</pallas_src>

<mosaic_0001>
module attributes {stable_mosaic.version = 11 : i64} {
  func.func @_separate_fcs_kernel(%arg0: i32, %arg1: i32, %arg2: memref<4x8x32xf32, #tpu.memory_space<vmem>>, %arg3: memref<4x32x16xf32, #tpu.memory_space<vmem>>, %arg4: memref<4x8x16xf32, #tpu.memory_space<vmem>>) attributes {dimension_semantics = [#tpu.dimension_semantics<parallel>, #tpu.dimension_semantics<arbitrary>], iteration_bounds = array<i64: 1, 1>, scalar_prefetch = 0 : i64, scratch_operands = 0 : i64, tpu.core_type = #tpu.core_type<tc>, window_params = [{transform_indices = @transform_0, window_bounds = array<i64: 4, 8, 32>}, {transform_indices = @transform_1, window_bounds = array<i64: 4, 32, 16>}, {transform_indices = @transform_2, window_bounds = array<i64: 4, 8, 16>}]} {
    %c0 = arith.constant 0 : index
    %c0_0 = arith.constant 0 : index
    %c0_1 = arith.constant 0 : index
    %0 = vector.load %arg2[%c0, %c0_0, %c0_1] : memref<4x8x32xf32, #tpu.memory_space<vmem>>, vector<4x8x32xf32>
    %c0_2 = arith.constant 0 : index
    %c0_3 = arith.constant 0 : index
    %c0_4 = arith.constant 0 : index
    %1 = vector.load %arg3[%c0_2, %c0_3, %c0_4] : memref<4x32x16xf32, #tpu.memory_space<vmem>>, vector<4x32x16xf32>
    "tpu.trace_start"() <{level = 10 : i32, message = "gnc,gck->gnk"}> : () -> ()
    %cst = arith.constant dense<0.000000e+00> : vector<4x8x16xf32>
    %2 = tpu.matmul %0, %1, %cst {dimension_numbers = #tpu.dot_dimension_numbers<[2], [1], [1], [2], [0, 0, 0, 1, 1, 2], [0], [0]>} : vector<4x8x32xf32>, vector<4x32x16xf32>, vector<4x8x16xf32> -> vector<4x8x16xf32>
    "tpu.trace_stop"() : () -> ()
    %c0_5 = arith.constant 0 : index
    %c0_6 = arith.constant 0 : index
    %c0_7 = arith.constant 0 : index
    %3 = vector.load %arg4[%c0_5, %c0_6, %c0_7] : memref<4x8x16xf32, #tpu.memory_space<vmem>>, vector<4x8x16xf32>
    tpu.vector_store %arg4[%c0_5, %c0_6, %c0_7], %2 {strides = array<i32>} : memref<4x8x16xf32, #tpu.memory_space<vmem>>, vector<4x8x16xf32>,
    return
  }
  func.func @transform_0(%arg0: i32, %arg1: i32) -> (i32, i32, i32) {
    %c0_i32 = arith.constant 0 : i32
    %c0_i32_0 = arith.constant 0 : i32
    %c0_i32_1 = arith.constant 0 : i32
    return %arg0, %c0_i32, %c0_i32_0 : i32, i32, i32
  }
  func.func @transform_1(%arg0: i32, %arg1: i32) -> (i32, i32, i32) {
    %c0_i32 = arith.constant 0 : i32
    %c0_i32_0 = arith.constant 0 : i32
    return %arg0, %c0_i32, %arg1 : i32, i32, i32
  }
  func.func @transform_2(%arg0: i32, %arg1: i32) -> (i32, i32, i32) {
    %c0_i32 = arith.constant 0 : i32
    %c0_i32_0 = arith.constant 0 : i32
    return %arg0, %c0_i32, %arg1 : i32, i32, i32
  }
}

</mosaic_0001>

<llo_original>
// kernel: tpu_custom_call.1
$region0: #{tpu_custom_call.1}
  #allocation0 [shape = 'u32[]', space=smem, size = 0x4, offset = 0x4, fixed_abs, tag = 'smem constant byte address 0x4 - core index']
  #allocation1 [shape = 'u32[144,128]{1,0:T(1,128)}', space=vmem, size = 0x12000, scoped, tag = 'internal scratch']
  %s0 = inlined_call_operand.vmem [shape: f32[4,8,32], index: 0, kind: input, shape index: {}]
  %s1 = inlined_call_operand.vmem [shape: f32[4,32,16], index: 1, kind: input, shape index: {}]
  %s2 = inlined_call_operand.hbm [shape: f32[4,8,16], index: 2, kind: output, shape index: {}]
  %s3 = sld [smem:[#allocation0]]
  $region18: #{tpu_custom_call.1} parent=0
    _
  %s5 = ssub.s32 1, %s3
  %s6 = scalar_select 0, %s5, %s3
  $region1: #{tpu_custom_call.1} parent=0
    #allocation2 [shape = 'u8[16384]{0}', space=vmem, size = 0x4000, scoped, tag = 'output window, operand 0, single buffered']
    #allocation3 [shape = 's32[1]{0}', space=sflag, size = 0x4, scoped, tag = 'scoped memory for tpu_custom_call.1']
    %7 = vsyncpa [#allocation3], 0
    // Predicated region
    $region2: #{tpu_custom_call.1} parent=1 // pred_check
      _
    $region3: #{tpu_custom_call.1} parent=1 // pred_check_branch
      %9 = sbr.rel (0) target = $region5
    $region4: #{tpu_custom_call.1} parent=1 // pred_region
      _
    $region5: #{tpu_custom_call.1} parent=1 // pred_fallthru
      _
    // Predicated region
    $region6: #{tpu_custom_call.1} parent=1 // pred_check
      _
    $region7: #{tpu_custom_call.1} parent=1 // pred_check_branch
      %11 = sbr.rel (0) target = $region9
    $region8: #{tpu_custom_call.1} parent=1 // pred_region
      _
    $region9: #{tpu_custom_call.1} parent=1 // pred_fallthru
      _
    %v12 = vld [vmem:[%s0] sm:$0xff]
    %v13 = vld [vmem:[%s0 + $0x8] sm:$0xff]
    %v14 = vld [vmem:[%s0 + $0x10] sm:$0xff]
    %v15 = vld [vmem:[%s0 + $0x18] sm:$0xff]
    %v16 = vld [vmem:[%s1] sm:$0xff]
    %v17 = vld [vmem:[%s1 + $0x8] sm:$0xff]
    %v18 = vld [vmem:[%s1 + $0x10] sm:$0xff]
    %v19 = vld [vmem:[%s1 + $0x18] sm:$0xff]
    %v20 = vld [vmem:[%s1 + $0x20] sm:$0xff]
    %v21 = vld [vmem:[%s1 + $0x28] sm:$0xff]
    %v22 = vld [vmem:[%s1 + $0x30] sm:$0xff]
    %v23 = vld [vmem:[%s1 + $0x38] sm:$0xff]
    %v24 = vld [vmem:[%s1 + $0x40] sm:$0xff]
    %v25 = vld [vmem:[%s1 + $0x48] sm:$0xff]
    %v26 = vld [vmem:[%s1 + $0x50] sm:$0xff]
    %v27 = vld [vmem:[%s1 + $0x58] sm:$0xff]
    %v28 = vld [vmem:[%s1 + $0x60] sm:$0xff]
    %v29 = vld [vmem:[%s1 + $0x68] sm:$0xff]
    %v30 = vld [vmem:[%s1 + $0x70] sm:$0xff]
    %v31 = vld [vmem:[%s1 + $0x78] sm:$0xff]
    %vm32 = vcmask 261120
    %v34 = vsel %vm32, %v12, 0
    %36 = vmatprep.subr.mxu0 0.0
    %37 = vmatpush1.msra.mxu0 %v16
    %38 = vmatprep.subr.mxu0 0.0
    %39 = vmatpush1.msra.mxu0 %v17
    %40 = vmatprep.subr.mxu0 0.0
    %41 = vmatpush1.msra.mxu0 %v18
    %42 = vmatprep.subr.mxu0 0.0
    %43 = vmatpush1.msra.mxu0 %v19
    %44 = vmatprep.subr.mxu0 0.0
    %45 = vmatpush1.msra.mxu0 0.0
    %46 = vmatprep.subr.mxu0 0.0
    %47 = vmatpush1.msra.mxu0 0.0
    %48 = vmatprep.subr.mxu0 0.0
    %49 = vmatpush1.msra.mxu0 0.0
    %50 = vmatprep.subr.mxu0 0.0
    %51 = vmatpush1.msra.mxu0 0.0
    %52 = vmatprep.subr.mxu0 0.0
    %53 = vmatpush1.msra.mxu0 0.0
    %54 = vmatprep.subr.mxu0 0.0
    %55 = vmatpush1.msra.mxu0 0.0
    %56 = vmatprep.subr.mxu0 0.0
    %57 = vmatpush1.msra.mxu0 0.0
    %58 = vmatprep.subr.mxu0 0.0
    %59 = vmatpush1.msra.mxu0 0.0
    %60 = vmatprep.subr.mxu0 0.0
    %61 = vmatpush1.msra.mxu0 0.0
    %62 = vmatprep.subr.mxu0 0.0
    %63 = vmatpush1.msra.mxu0 0.0
    %64 = vmatprep.subr.mxu0 0.0
    %65 = vmatpush1.msra.mxu0 0.0
    %66 = vmatprep.subr.mxu0 0.0
    %67 = vmatpush1.msra.mxu0 0.0
    %68 = vmatprep.subr.mxu0 0.0
    %69 = vmatpush1.msra.mxu0 0.0
    %70 = vmatprep.subr.mxu0 0.0
    %71 = vmatpush1.msra.mxu0 0.0
    %72 = vmatprep.subr.mxu0 0.0
    %73 = vmatpush1.msra.mxu0 0.0
    %74 = vmatprep.subr.mxu0 0.0
    %75 = vmatpush1.msra.mxu0 0.0
    %76 = vmatprep.subr.mxu0 0.0
    %77 = vmatpush1.msra.mxu0 0.0
    %78 = vmatprep.subr.mxu0 0.0
    %79 = vmatpush1.msra.mxu0 0.0
    %80 = vmatprep.subr.mxu0 0.0
    %81 = vmatpush1.msra.mxu0 0.0
    %82 = vmatprep.subr.mxu0 0.0
    %83 = vmatpush1.msra.mxu0 0.0
    %84 = vmatprep.subr.mxu0 0.0
    %85 = vmatpush1.msra.mxu0 0.0
    %86 = vmatprep.subr.mxu0 0.0
    %87 = vmatpush1.msra.mxu0 0.0
    %88 = vmatprep.subr.mxu0 0.0
    %89 = vmatpush1.msra.mxu0 0.0
    %90 = vmatprep.subr.mxu0 0.0
    %91 = vmatpush1.msra.mxu0 0.0
    %92 = vmatprep.subr.mxu0 0.0
    %93 = vmatpush1.msra.mxu0 0.0
    %94 = vmatprep.subr.mxu0 0.0
    %95 = vmatpush1.msra.mxu0 0.0
    %96 = vmatprep.subr.mxu0 0.0
    %97 = vmatpush1.msra.mxu0 0.0
    %98 = vmatprep.subr.mxu0 0.0
    %99 = vmatpush1.msra.mxu0 0.0
    %100 = vmatprep.mubr.f32.mxu0 0.0
    %101 = vmatmul.mubr.f32.gmra.mrb[0].mxu0 %v34
    %v102 = vpop.f32.mrb[0].mxu0
    %v103 = vadd.f32 0.0, %v102
    %v104 = vpop.f32.mrb[0].mxu0
    %105 = vdwg.mxu0
    %v107 = vsel %vm32, %v13, 0
    %109 = vmatprep.subr.mxu0 0.0
    %110 = vmatpush1.msra.mxu0 %v20
    %111 = vmatprep.subr.mxu0 0.0
    %112 = vmatpush1.msra.mxu0 %v21
    %113 = vmatprep.subr.mxu0 0.0
    %114 = vmatpush1.msra.mxu0 %v22
    %115 = vmatprep.subr.mxu0 0.0
    %116 = vmatpush1.msra.mxu0 %v23
    %117 = vmatprep.subr.mxu0 0.0
    %118 = vmatpush1.msra.mxu0 0.0
    %119 = vmatprep.subr.mxu0 0.0
    %120 = vmatpush1.msra.mxu0 0.0
    %121 = vmatprep.subr.mxu0 0.0
    %122 = vmatpush1.msra.mxu0 0.0
    %123 = vmatprep.subr.mxu0 0.0
    %124 = vmatpush1.msra.mxu0 0.0
    %125 = vmatprep.subr.mxu0 0.0
    %126 = vmatpush1.msra.mxu0 0.0
    %127 = vmatprep.subr.mxu0 0.0
    %128 = vmatpush1.msra.mxu0 0.0
    %129 = vmatprep.subr.mxu0 0.0
    %130 = vmatpush1.msra.mxu0 0.0
    %131 = vmatprep.subr.mxu0 0.0
    %132 = vmatpush1.msra.mxu0 0.0
    %133 = vmatprep.subr.mxu0 0.0
    %134 = vmatpush1.msra.mxu0 0.0
    %135 = vmatprep.subr.mxu0 0.0
    %136 = vmatpush1.msra.mxu0 0.0
    %137 = vmatprep.subr.mxu0 0.0
    %138 = vmatpush1.msra.mxu0 0.0
    %139 = vmatprep.subr.mxu0 0.0
    %140 = vmatpush1.msra.mxu0 0.0
    %141 = vmatprep.subr.mxu0 0.0
    %142 = vmatpush1.msra.mxu0 0.0
    %143 = vmatprep.subr.mxu0 0.0
    %144 = vmatpush1.msra.mxu0 0.0
    %145 = vmatprep.subr.mxu0 0.0
    %146 = vmatpush1.msra.mxu0 0.0
    %147 = vmatprep.subr.mxu0 0.0
    %148 = vmatpush1.msra.mxu0 0.0
    %149 = vmatprep.subr.mxu0 0.0
    %150 = vmatpush1.msra.mxu0 0.0
    %151 = vmatprep.subr.mxu0 0.0
    %152 = vmatpush1.msra.mxu0 0.0
    %153 = vmatprep.subr.mxu0 0.0
    %154 = vmatpush1.msra.mxu0 0.0
    %155 = vmatprep.subr.mxu0 0.0
    %156 = vmatpush1.msra.mxu0 0.0
    %157 = vmatprep.subr.mxu0 0.0
    %158 = vmatpush1.msra.mxu0 0.0
    %159 = vmatprep.subr.mxu0 0.0
    %160 = vmatpush1.msra.mxu0 0.0
    %161 = vmatprep.subr.mxu0 0.0
    %162 = vmatpush1.msra.mxu0 0.0
    %163 = vmatprep.subr.mxu0 0.0
    %164 = vmatpush1.msra.mxu0 0.0
    %165 = vmatprep.subr.mxu0 0.0
    %166 = vmatpush1.msra.mxu0 0.0
    %167 = vmatprep.subr.mxu0 0.0
    %168 = vmatpush1.msra.mxu0 0.0
    %169 = vmatprep.subr.mxu0 0.0
    %170 = vmatpush1.msra.mxu0 0.0
    %171 = vmatprep.subr.mxu0 0.0
    %172 = vmatpush1.msra.mxu0 0.0
    %173 = vmatprep.mubr.f32.mxu0 0.0
    %174 = vmatmul.mubr.f32.gmra.mrb[0].mxu0 %v107
    %v175 = vpop.f32.mrb[0].mxu0
    %v176 = vadd.f32 0.0, %v175
    %v177 = vpop.f32.mrb[0].mxu0
    %178 = vdwg.mxu0
    %v180 = vsel %vm32, %v14, 0
    %182 = vmatprep.subr.mxu0 0.0
    %183 = vmatpush1.msra.mxu0 %v24
    %184 = vmatprep.subr.mxu0 0.0
    %185 = vmatpush1.msra.mxu0 %v25
    %186 = vmatprep.subr.mxu0 0.0
    %187 = vmatpush1.msra.mxu0 %v26
    %188 = vmatprep.subr.mxu0 0.0
    %189 = vmatpush1.msra.mxu0 %v27
    %190 = vmatprep.subr.mxu0 0.0
    %191 = vmatpush1.msra.mxu0 0.0
    %192 = vmatprep.subr.mxu0 0.0
    %193 = vmatpush1.msra.mxu0 0.0
    %194 = vmatprep.subr.mxu0 0.0
    %195 = vmatpush1.msra.mxu0 0.0
    %196 = vmatprep.subr.mxu0 0.0
    %197 = vmatpush1.msra.mxu0 0.0
    %198 = vmatprep.subr.mxu0 0.0
    %199 = vmatpush1.msra.mxu0 0.0
    %200 = vmatprep.subr.mxu0 0.0
    %201 = vmatpush1.msra.mxu0 0.0
    %202 = vmatprep.subr.mxu0 0.0
    %203 = vmatpush1.msra.mxu0 0.0
    %204 = vmatprep.subr.mxu0 0.0
    %205 = vmatpush1.msra.mxu0 0.0
    %206 = vmatprep.subr.mxu0 0.0
    %207 = vmatpush1.msra.mxu0 0.0
    %208 = vmatprep.subr.mxu0 0.0
    %209 = vmatpush1.msra.mxu0 0.0
    %210 = vmatprep.subr.mxu0 0.0
    %211 = vmatpush1.msra.mxu0 0.0
    %212 = vmatprep.subr.mxu0 0.0
    %213 = vmatpush1.msra.mxu0 0.0
    %214 = vmatprep.subr.mxu0 0.0
    %215 = vmatpush1.msra.mxu0 0.0
    %216 = vmatprep.subr.mxu0 0.0
    %217 = vmatpush1.msra.mxu0 0.0
    %218 = vmatprep.subr.mxu0 0.0
    %219 = vmatpush1.msra.mxu0 0.0
    %220 = vmatprep.subr.mxu0 0.0
    %221 = vmatpush1.msra.mxu0 0.0
    %222 = vmatprep.subr.mxu0 0.0
    %223 = vmatpush1.msra.mxu0 0.0
    %224 = vmatprep.subr.mxu0 0.0
    %225 = vmatpush1.msra.mxu0 0.0
    %226 = vmatprep.subr.mxu0 0.0
    %227 = vmatpush1.msra.mxu0 0.0
    %228 = vmatprep.subr.mxu0 0.0
    %229 = vmatpush1.msra.mxu0 0.0
    %230 = vmatprep.subr.mxu0 0.0
    %231 = vmatpush1.msra.mxu0 0.0
    %232 = vmatprep.subr.mxu0 0.0
    %233 = vmatpush1.msra.mxu0 0.0
    %234 = vmatprep.subr.mxu0 0.0
    %235 = vmatpush1.msra.mxu0 0.0
    %236 = vmatprep.subr.mxu0 0.0
    %237 = vmatpush1.msra.mxu0 0.0
    %238 = vmatprep.subr.mxu0 0.0
    %239 = vmatpush1.msra.mxu0 0.0
    %240 = vmatprep.subr.mxu0 0.0
    %241 = vmatpush1.msra.mxu0 0.0
    %242 = vmatprep.subr.mxu0 0.0
    %243 = vmatpush1.msra.mxu0 0.0
    %244 = vmatprep.subr.mxu0 0.0
    %245 = vmatpush1.msra.mxu0 0.0
    %246 = vmatprep.mubr.f32.mxu0 0.0
    %247 = vmatmul.mubr.f32.gmra.mrb[0].mxu0 %v180
    %v248 = vpop.f32.mrb[0].mxu0
    %v249 = vadd.f32 0.0, %v248
    %v250 = vpop.f32.mrb[0].mxu0
    %251 = vdwg.mxu0
    %v253 = vsel %vm32, %v15, 0
    %255 = vmatprep.subr.mxu0 0.0
    %256 = vmatpush1.msra.mxu0 %v28
    %257 = vmatprep.subr.mxu0 0.0
    %258 = vmatpush1.msra.mxu0 %v29
    %259 = vmatprep.subr.mxu0 0.0
    %260 = vmatpush1.msra.mxu0 %v30
    %261 = vmatprep.subr.mxu0 0.0
    %262 = vmatpush1.msra.mxu0 %v31
    %263 = vmatprep.subr.mxu0 0.0
    %264 = vmatpush1.msra.mxu0 0.0
    %265 = vmatprep.subr.mxu0 0.0
    %266 = vmatpush1.msra.mxu0 0.0
    %267 = vmatprep.subr.mxu0 0.0
    %268 = vmatpush1.msra.mxu0 0.0
    %269 = vmatprep.subr.mxu0 0.0
    %270 = vmatpush1.msra.mxu0 0.0
    %271 = vmatprep.subr.mxu0 0.0
    %272 = vmatpush1.msra.mxu0 0.0
    %273 = vmatprep.subr.mxu0 0.0
    %274 = vmatpush1.msra.mxu0 0.0
    %275 = vmatprep.subr.mxu0 0.0
    %276 = vmatpush1.msra.mxu0 0.0
    %277 = vmatprep.subr.mxu0 0.0
    %278 = vmatpush1.msra.mxu0 0.0
    %279 = vmatprep.subr.mxu0 0.0
    %280 = vmatpush1.msra.mxu0 0.0
    %281 = vmatprep.subr.mxu0 0.0
    %282 = vmatpush1.msra.mxu0 0.0
    %283 = vmatprep.subr.mxu0 0.0
    %284 = vmatpush1.msra.mxu0 0.0
    %285 = vmatprep.subr.mxu0 0.0
    %286 = vmatpush1.msra.mxu0 0.0
    %287 = vmatprep.subr.mxu0 0.0
    %288 = vmatpush1.msra.mxu0 0.0
    %289 = vmatprep.subr.mxu0 0.0
    %290 = vmatpush1.msra.mxu0 0.0
    %291 = vmatprep.subr.mxu0 0.0
    %292 = vmatpush1.msra.mxu0 0.0
    %293 = vmatprep.subr.mxu0 0.0
    %294 = vmatpush1.msra.mxu0 0.0
    %295 = vmatprep.subr.mxu0 0.0
    %296 = vmatpush1.msra.mxu0 0.0
    %297 = vmatprep.subr.mxu0 0.0
    %298 = vmatpush1.msra.mxu0 0.0
    %299 = vmatprep.subr.mxu0 0.0
    %300 = vmatpush1.msra.mxu0 0.0
    %301 = vmatprep.subr.mxu0 0.0
    %302 = vmatpush1.msra.mxu0 0.0
    %303 = vmatprep.subr.mxu0 0.0
    %304 = vmatpush1.msra.mxu0 0.0
    %305 = vmatprep.subr.mxu0 0.0
    %306 = vmatpush1.msra.mxu0 0.0
    %307 = vmatprep.subr.mxu0 0.0
    %308 = vmatpush1.msra.mxu0 0.0
    %309 = vmatprep.subr.mxu0 0.0
    %310 = vmatpush1.msra.mxu0 0.0
    %311 = vmatprep.subr.mxu0 0.0
    %312 = vmatpush1.msra.mxu0 0.0
    %313 = vmatprep.subr.mxu0 0.0
    %314 = vmatpush1.msra.mxu0 0.0
    %315 = vmatprep.subr.mxu0 0.0
    %316 = vmatpush1.msra.mxu0 0.0
    %317 = vmatprep.subr.mxu0 0.0
    %318 = vmatpush1.msra.mxu0 0.0
    %319 = vmatprep.mubr.f32.mxu0 0.0
    %320 = vmatmul.mubr.f32.gmra.mrb[0].mxu0 %v253
    %v321 = vpop.f32.mrb[0].mxu0
    %v322 = vadd.f32 0.0, %v321
    %v323 = vpop.f32.mrb[0].mxu0
    %324 = vdwg.mxu0
    %vm325 = vcmask 130048
    %326 = vst.msk [vmem:[#allocation2] sm:$0xff] %vm325, %v103
    %327 = vst.msk [vmem:[#allocation2 + $0x8] sm:$0xff] %vm325, %v176
    %328 = vst.msk [vmem:[#allocation2 + $0x10] sm:$0xff] %vm325, %v249
    %329 = vst.msk [vmem:[#allocation2 + $0x18] sm:$0xff] %vm325, %v322
    // Predicated region
    $region10: #{tpu_custom_call.1} parent=1 // pred_check
      _
    $region11: #{tpu_custom_call.1} parent=1 // pred_check_branch
      %331 = sbr.rel (0) target = $region13
    $region12: #{tpu_custom_call.1} parent=1 // pred_region
      %s333 = ssub.s32 512, 512
      %334 = vsyncadd [#allocation3], %s333
      %s335 = sshll.u32 [#allocation2], 4
      %s336 = int_to_ptr.vmem [resolvable:$true] %s335
      %341 = dma.vmem_to_hbm [thread:$0]  %s336, 512, %s2, [#allocation3], 128, 128, 8
    $region13: #{tpu_custom_call.1} parent=1 // pred_fallthru
      _
    // Predicated region
    $region14: #{tpu_custom_call.1} parent=1 // pred_check
      _
    $region15: #{tpu_custom_call.1} parent=1 // pred_check_branch
      %343 = sbr.rel (0) target = $region17
    $region16: #{tpu_custom_call.1} parent=1 // pred_region
      %344 = dma.done [#allocation3], 512
    $region17: #{tpu_custom_call.1} parent=1 // pred_fallthru
      _
    %345 = vsyncpa [#allocation3], 1

</llo_original>
